<compile_context>
chip_gen: v6e
topology: v6e:2x2x1
jax: 0.10.0
libtpu: 0.0.40
codegen_flags: <defaults>
</compile_context>

<pallas_src>
import jax
import jax.numpy as jnp
from jax.experimental import pallas as pl
from jax.experimental.pallas import tpu as pltpu


def _make_shift_kernel(W):
    def kernel(tx_ref, x_ref, o_ref):
        # tx_ref: SMEM (1,) int32 -- horizontal integer shift (scalar prefetch)
        # x_ref:  VMEM (tile_rows, W) input block in native layout
        # o_ref:  VMEM (tile_rows, W) output block
        tx = tx_ref[0]
        # One-hot shift matrix: S[i, j] = 1  iff  j == i + tx.
        # out[:, j] = sum_i x[:, i] * S[i, j] = x[:, j - tx], 0 where j - tx is
        # outside [0, W) -- the zero fill falls out of the all-zero columns.
        src = jax.lax.broadcasted_iota(jnp.int32, (W, W), 0)  # source column i
        dst = jax.lax.broadcasted_iota(jnp.int32, (W, W), 1)  # destination column j
        shift_mat = (dst - src == tx).astype(jnp.float32)
        o_ref[...] = jnp.dot(
            x_ref[...].astype(jnp.float32),
            shift_mat,
            preferred_element_type=jnp.float32,
        ).astype(o_ref.dtype)

    return kernel


def _pick_row_tile(M, W, itemsize):
    """Rows per block: a multiple of 8 (sublane tile), block capped at ~2 MiB
    (VMEM-safe with double buffering on every generation incl. v7x's 64 MiB),
    and -- when M allows -- at least 2 grid steps so the 'parallel' grid axis
    can shard across v7x's two TensorCores."""
    bytes_per_row = max(W * itemsize, 1)
    cap = max(8, ((2 * 1024 * 1024) // bytes_per_row) // 8 * 8)
    tile = min(1024, cap)
    m_pad = ((M + 7) // 8) * 8
    if tile >= m_pad:
        tile = m_pad if m_pad < 16 else ((m_pad // 2 + 7) // 8) * 8
    return tile


def _apply_translate(x, tx):
    """out[n, c, h, j] = x[n, c, h, j - tx] if 0 <= j - tx < W else 0 (NCHW)."""
    N, C, H, W = x.shape
    M = N * C * H
    tile_rows = _pick_row_tile(M, W, x.dtype.itemsize)

    x2 = x.reshape(M, W)                                   # free, contiguous view
    tx_arr = jnp.reshape(tx.astype(jnp.int32), (1,))       # scalar-prefetch arg

    out2 = pl.pallas_call(
        _make_shift_kernel(W),
        out_shape=jax.ShapeDtypeStruct((M, W), x.dtype),
        grid_spec=pltpu.PrefetchScalarGridSpec(
            num_scalar_prefetch=1,
            grid=(pl.cdiv(M, tile_rows),),
            in_specs=[pl.BlockSpec((tile_rows, W), lambda m, tx_ref: (m, 0))],
            out_specs=pl.BlockSpec((tile_rows, W), lambda m, tx_ref: (m, 0)),
        ),
        compiler_params=pltpu.CompilerParams(
            dimension_semantics=("parallel",),
            vmem_limit_bytes=32 * 1024 * 1024,
        ),
    )(tx_arr, x2)

    return out2.reshape(N, C, H, W)


def translate_x(x, *, value, p, key):
    """JAX/Pallas equivalent of TranslateX(value, p).forward(x) for NCHW input."""
    N, C, H, W = x.shape
    k_apply, k_tx = jax.random.split(key)

    apply_tf = jax.random.uniform(k_apply, ()) < p
    # torchvision RandomAffine: max_dx = value * width, tx = round(U(-max_dx, max_dx)).
    max_dx = float(value) * W
    tx = jnp.round(
        jax.random.uniform(k_tx, (), minval=-max_dx, maxval=max_dx)
    ).astype(jnp.int32)

    # Skip the kernel entirely on the "not applied" branch.
    # TODO(synk): under jax.vmap this cond lowers to select (both branches run);
    # gate at the pipeline level if per-sample batching is used.
    return jax.lax.cond(
        apply_tf,
        lambda x_, tx_: _apply_translate(x_, tx_),
        lambda x_, tx_: x_,
        x,
        tx,
    )


if __name__ == "__main__":
    key = jax.random.PRNGKey(0)
    k_x, k_rng = jax.random.split(key)

    # Small NCHW batch consistent with the module's image-transform semantics.
    x = jax.random.normal(k_x, (2, 4, 16, 16), dtype=jnp.float32)

    # Sanity-check the applied path against a pure-JAX shift reference.
    # The one-hot matmul is exact at f32 (all products are x*1 or x*0); the
    # tolerance below is only slack for MXU f32 multi-pass differences across
    # TPU generations, and is far below any real indexing / fill error (~O(1)).
    y_p3 = _apply_translate(x, jnp.int32(3))
    ref_p3 = jnp.zeros_like(x).at[..., 3:].set(x[..., :-3])
    assert jnp.allclose(y_p3, ref_p3, atol=2e-2, rtol=2e-2), "translate mismatch (tx=+3)"

    y_m2 = _apply_translate(x, jnp.int32(-2))
    ref_m2 = jnp.zeros_like(x).at[..., :-2].set(x[..., 2:])
    assert jnp.allclose(y_m2, ref_m2, atol=2e-2, rtol=2e-2), "translate mismatch (tx=-2)"

    y_0 = _apply_translate(x, jnp.int32(0))
    assert jnp.allclose(y_0, x, atol=2e-2, rtol=2e-2), "translate mismatch (tx=0)"

    # Full module forward: random gate + random translation amount.
    y = translate_x(x, value=0.3, p=0.5, key=k_rng)
    jax.block_until_ready(y)

    assert y.shape == x.shape and y.dtype == x.dtype
    print("KERNEL_OK")
</pallas_src>

<mosaic_0001>
module attributes {stable_mosaic.version = 11 : i64} {
  func.func @kernel(%arg0: i32, %arg1: memref<1xi32, #tpu.memory_space<smem>>, %arg2: memref<64x16xf32, #tpu.memory_space<vmem>>, %arg3: memref<64x16xf32, #tpu.memory_space<vmem>>) attributes {dimension_semantics = [#tpu.dimension_semantics<parallel>], iteration_bounds = array<i64: 2>, scalar_prefetch = 1 : i64, scratch_operands = 0 : i64, tpu.core_type = #tpu.core_type<tc>, window_params = [{transform_indices = @transform_0, window_bounds = array<i64: 64, 16>}, {transform_indices = @transform_1, window_bounds = array<i64: 64, 16>}]} {
    %c0 = arith.constant 0 : index
    %0 = memref.load %arg1[%c0] : memref<1xi32, #tpu.memory_space<smem>>
    %1 = tpu.iota {dimensions = array<i32: 0>} : vector<16x16xi32>
    %2 = tpu.iota {dimensions = array<i32: 1>} : vector<16x16xi32>
    %3 = arith.subi %2, %1 : vector<16x16xi32>
    %4 = vector.broadcast %0 : i32 to vector<16x16xi32>
    %5 = arith.cmpi eq, %3, %4 : vector<16x16xi32>
    %6 = arith.extui %5 : vector<16x16xi1> to vector<16x16xi32>
    %7 = arith.sitofp %6 : vector<16x16xi32> to vector<16x16xf32>
    %c0_0 = arith.constant 0 : index
    %c0_1 = arith.constant 0 : index
    %8 = vector.load %arg2[%c0_0, %c0_1] : memref<64x16xf32, #tpu.memory_space<vmem>>, vector<64x16xf32>
    %cst = arith.constant dense<0.000000e+00> : vector<64x16xf32>
    %9 = tpu.matmul %8, %7, %cst {dimension_numbers = #tpu.dot_dimension_numbers<[1], [0], [0], [1], [0, 0, 1, 1], [], []>} : vector<64x16xf32>, vector<16x16xf32>, vector<64x16xf32> -> vector<64x16xf32>
    %c0_2 = arith.constant 0 : index
    %c0_3 = arith.constant 0 : index
    %10 = vector.load %arg3[%c0_2, %c0_3] : memref<64x16xf32, #tpu.memory_space<vmem>>, vector<64x16xf32>
    tpu.vector_store %arg3[%c0_2, %c0_3], %9 {strides = array<i32>} : memref<64x16xf32, #tpu.memory_space<vmem>>, vector<64x16xf32>,
    return
  }
  func.func @transform_0(%arg0: i32, %arg1: memref<1xi32, #tpu.memory_space<smem>>) -> (i32, i32) {
    %c0_i32 = arith.constant 0 : i32
    %c0_i32_0 = arith.constant 0 : i32
    return %arg0, %c0_i32 : i32, i32
  }
  func.func @transform_1(%arg0: i32, %arg1: memref<1xi32, #tpu.memory_space<smem>>) -> (i32, i32) {
    %c0_i32 = arith.constant 0 : i32
    %c0_i32_0 = arith.constant 0 : i32
    return %arg0, %c0_i32 : i32, i32
  }
}

</mosaic_0001>

<llo_original>
// kernel: tpu_custom_call.1
$region0: #{tpu_custom_call.1}
  #allocation0 [shape = 'u32[]', space=smem, size = 0x4, offset = 0x4, fixed_abs, tag = 'smem constant byte address 0x4 - core index']
  #allocation1 [shape = 'u32[144,128]{1,0:T(1,128)}', space=vmem, size = 0x12000, scoped, tag = 'internal scratch']
  #allocation2 [shape = 's32[1]{0}', space=sflag, size = 0x4, scoped, tag = 'scoped memory for tpu_custom_call.1']
  #allocation3 [shape = 's32[1]{0:T(128)S(6)}', space=smem, size = 0x200, scoped, tag = 'prefetched SMEM operand 0']
  %s0 = inlined_call_operand.<no memory space> [shape: s32[1], index: 0, kind: input, shape index: {}]
  %s1 = inlined_call_operand.vmem [shape: f32[128,16], index: 1, kind: input, shape index: {}]
  %s2 = inlined_call_operand.vmem [shape: f32[128,16], index: 2, kind: output, shape index: {}]
  %s3 = sld [smem:[#allocation0]]
  $region37: #{tpu_custom_call.1} parent=0
    _
  %s5 = ssub.s32 1, %s3
  %s6 = scalar_select 0, %s5, %s3
  %7 = sst [smem:[#allocation3]] %s0
  loop: start=0, step=1, limit=4
  $region2: #{tpu_custom_call.1} parent=0 // loop_pre_header
    _
  $region3: #{tpu_custom_call.1} parent=0 // loop_header
    %s9 = sphi 0, %s13
    %p10 = scmp.ge.s32.totalorder %s9, 4
    %s19 = sphi 0, %s21
    %s22 = sphi 0, %s19
    %s23 = sphi 0, %s22
    %s39 = sphi 0, %s23
    %s45 = sphi 0, %s47
    %s48 = sphi 0, %s45
    %s49 = sphi 0, %s48
    %s65 = sphi 0, %s49
  $region4: #{tpu_custom_call.1} parent=0 // loop_header_branch
    %12 = sbr.rel (%p10) target = $region8
  $region5: #{tpu_custom_call.1} parent=0 // loop_body
    %s14 = ssub.s32 %s9, 1
    %s15 = ssub.s32 %s9, 2
    %s16 = sadd.s32 %s9, 1
    %s17 = ssub.s32 %s9, %s16
    %p18 = scmp.eq.s32.totalorder %s17, 0
    %s20 = sadd.s32 %s19, 1
    %s21 = scalar_select %p18, %s19, %s20
    %p24 = pneg %p18
    %p25 = scmp.eq.s32.totalorder %s9, 1
    %p26 = por %p24, %p25
    %p27 = scmp.ne.s32.totalorder %s19, %s22
    %p28 = scmp.eq.s32.totalorder %s9, 0
    %p29 = por %p27, %p28
    %p30 = scmp.ne.s32.totalorder %s19, %s22
    %p31 = scmp.eq.s32.totalorder %s14, 1
    %p32 = por %p30, %p31
    %p33 = scmp.ne.s32.totalorder %s22, %s23
    %p34 = scmp.eq.s32.totalorder %s14, 0
    %p35 = por %p33, %p34
    %p36 = scmp.ne.s32.totalorder %s22, %s23
    %p37 = scmp.eq.s32.totalorder %s15, 1
    %p38 = por %p36, %p37
    %p40 = scmp.ne.s32.totalorder %s23, %s39
    %p41 = scmp.eq.s32.totalorder %s15, 0
    %p42 = por %p40, %p41
    %s43 = ssub.s32 %s9, %s16
    %p44 = scmp.eq.s32.totalorder %s43, 0
    %s46 = sadd.s32 %s45, 1
    %s47 = scalar_select %p44, %s45, %s46
    %p50 = pneg %p44
    %p51 = scmp.eq.s32.totalorder %s9, 1
    %p52 = por %p50, %p51
    %p53 = scmp.ne.s32.totalorder %s45, %s48
    %p54 = scmp.eq.s32.totalorder %s9, 0
    %p55 = por %p53, %p54
    %p56 = scmp.ne.s32.totalorder %s45, %s48
    %p57 = scmp.eq.s32.totalorder %s14, 1
    %p58 = por %p56, %p57
    %p59 = scmp.ne.s32.totalorder %s48, %s49
    %p60 = scmp.eq.s32.totalorder %s14, 0
    %p61 = por %p59, %p60
    %p62 = scmp.ne.s32.totalorder %s48, %s49
    %p63 = scmp.eq.s32.totalorder %s15, 1
    %p64 = por %p62, %p63
    %p66 = scmp.ne.s32.totalorder %s49, %s65
    %p67 = scmp.eq.s32.totalorder %s15, 0
    %p68 = por %p66, %p67
    %p69 = scmp.le.s32.totalorder 1, %s9
    %p70 = scmp.lt.s32.totalorder %s9, 3
    %p71 = pnand %p69, %p70
    %p72 = pneg %p71
    // Predicated region
    $region9: #{tpu_custom_call.1} parent=5 // pred_check
      _
    $region10: #{tpu_custom_call.1} parent=5 // pred_check_branch
      %74 = sbr.rel (%p71) target = $region12
    $region11: #{tpu_custom_call.1} parent=5 // pred_region
      %s75 = ssub.s32 %s9, 1
    $region12: #{tpu_custom_call.1} parent=5 // pred_fallthru
      _
    %p76 = scmp.lt.s32.totalorder %s9, 2
    // Predicated region
    $region13: #{tpu_custom_call.1} parent=5 // pred_check
      %p77 = pneg %p76
    $region14: #{tpu_custom_call.1} parent=5 // pred_check_branch
      %79 = sbr.rel (%p77) target = $region16
    $region15: #{tpu_custom_call.1} parent=5 // pred_region
      // Predicated region
      $region17: #{tpu_custom_call.1} parent=15 // pred_check
        %p80 = pneg %p29
      $region18: #{tpu_custom_call.1} parent=15 // pred_check_branch
        %82 = sbr.rel (%p80) target = $region20
      $region19: #{tpu_custom_call.1} parent=15 // pred_region
        %s83 = smul.u32 8, %s9
        %p84 = scmp.lt.s32.totalorder %s83, 15
        %s85 = scalar_select %p84, %s83, 15
        %s86 = smul.addr %s85, 8
        %s87 = scalar_lea.vmem %s1, %s86
        %s88 = smul.u32 8, %s9
      $region20: #{tpu_custom_call.1} parent=15 // pred_fallthru
        _
    $region16: #{tpu_custom_call.1} parent=5 // pred_fallthru
      _
    %p89 = scmp.le.s32.totalorder 1, %s9
    %p90 = scmp.lt.s32.totalorder %s9, 3
    %p91 = pnand %p89, %p90
    %p92 = pneg %p91
    // Predicated region
    $region21: #{tpu_custom_call.1} parent=5 // pred_check
      _
    $region22: #{tpu_custom_call.1} parent=5 // pred_check_branch
      %94 = sbr.rel (%p91) target = $region24
    $region23: #{tpu_custom_call.1} parent=5 // pred_region
      %s95 = ssub.s32 %s9, 1
      %s96 = smul.u32 8, %s14
      %p97 = scmp.lt.s32.totalorder %s96, 15
      %s98 = scalar_select %p97, %s96, 15
      %s99 = smul.addr %s98, 8
      %s100 = scalar_lea.vmem %s1, %s99
      %p101 = pneg %p35
      %p102 = pneg %p32
      %p103 = pneg %p61
      %p104 = pneg %p58
      %s105 = smul.u32 8, %s14
      %p106 = scmp.lt.s32.totalorder %s105, 15
      %s107 = scalar_select %p106, %s105, 15
      %s108 = smul.addr %s107, 8
      %s109 = scalar_lea.vmem %s2, %s108
      %s110 = smul.u32 8, %s14
      %p111 = scmp.lt.s32.totalorder %s110, 15
      %s112 = scalar_select %p111, %s110, 15
      %s113 = smul.addr %s112, 8
      %s114 = scalar_lea.vmem %s1, %s113
      %s115 = smul.u32 8, %s14
      %s116 = smul.u32 8, %s14
      %p117 = scmp.lt.s32.totalorder %s116, 15
      %s118 = scalar_select %p117, %s116, 15
      %s119 = smul.addr %s118, 8
      %s120 = scalar_lea.vmem %s2, %s119
      %s121 = smul.u32 8, %s14
      %s122 = sld [smem:[#allocation3]]
      %v123 = vlaneseq
      %v124 = vshrl.u32 %v123, 7
      %v125 = vadd.s32 %v124, 8
      %v126 = vlaneseq
      %v127 = vand.u32 %v126, 127
      %v128 = vsub.s32 %v127, %v124
      %v129 = vsub.s32 %v127, %v125
      %v130 = vstv %s122
      %vm131 = vcmp.eq.s32.totalorder %v128, %v130
      %vm132 = vcmp.eq.s32.totalorder %v129, %v130
      %v133 = vsel %vm131, 1, 0
      %v134 = vsel %vm132, 1, 0
      %v135 = vcvt.s32.f32 %v133
      %v136 = vcvt.s32.f32 %v134
      %v137 = vld [vmem:[%s114] sm:$0xff]
      %v138 = vld [vmem:[%s114 + $0x8] sm:$0xff]
      %v139 = vld [vmem:[%s114 + $0x10] sm:$0xff]
      %v140 = vld [vmem:[%s114 + $0x18] sm:$0xff]
      %v141 = vld [vmem:[%s114 + $0x20] sm:$0xff]
      %v142 = vld [vmem:[%s114 + $0x28] sm:$0xff]
      %v143 = vld [vmem:[%s114 + $0x30] sm:$0xff]
      %v144 = vld [vmem:[%s114 + $0x38] sm:$0xff]
      %vm145 = vcmask 130048
      %v147 = vsel %vm145, %v137, 0
      %v150 = vsel %vm145, %v138, 0
      %v153 = vsel %vm145, %v139, 0
      %v156 = vsel %vm145, %v140, 0
      %v159 = vsel %vm145, %v141, 0
      %v162 = vsel %vm145, %v142, 0
      %v165 = vsel %vm145, %v143, 0
      %v168 = vsel %vm145, %v144, 0
      %170 = vmatprep.subr.mxu0 0.0
      %171 = vmatpush1.msra.mxu0 0.0
      %172 = vmatprep.subr.mxu0 0.0
      %173 = vmatpush1.msra.mxu0 0.0
      %174 = vmatprep.subr.mxu0 0.0
      %175 = vmatpush1.msra.mxu0 0.0
      %176 = vmatprep.subr.mxu0 0.0
      %177 = vmatpush1.msra.mxu0 0.0
      %178 = vmatprep.subr.mxu0 0.0
      %179 = vmatpush1.msra.mxu0 0.0
      %180 = vmatprep.subr.mxu0 0.0
      %181 = vmatpush1.msra.mxu0 0.0
      %182 = vmatprep.subr.mxu0 0.0
      %183 = vmatpush1.msra.mxu0 0.0
      %184 = vmatprep.subr.mxu0 0.0
      %185 = vmatpush1.msra.mxu0 0.0
      %186 = vmatprep.subr.mxu0 0.0
      %187 = vmatpush1.msra.mxu0 0.0
      %188 = vmatprep.subr.mxu0 0.0
      %189 = vmatpush1.msra.mxu0 0.0
      %190 = vmatprep.subr.mxu0 0.0
      %191 = vmatpush1.msra.mxu0 0.0
      %192 = vmatprep.subr.mxu0 0.0
      %193 = vmatpush1.msra.mxu0 0.0
      %194 = vmatprep.subr.mxu0 0.0
      %195 = vmatpush1.msra.mxu0 0.0
      %196 = vmatprep.subr.mxu0 0.0
      %197 = vmatpush1.msra.mxu0 0.0
      %198 = vmatprep.subr.mxu0 0.0
      %199 = vmatpush1.msra.mxu0 %v136
      %200 = vmatprep.subr.mxu0 0.0
      %201 = vmatpush1.msra.mxu0 %v135
      %202 = vmatprep.subr.mxu0 0.0
      %203 = vmatpush2.msra.mxu0 0.0
      %204 = vmatprep.subr.mxu0 0.0
      %205 = vmatpush2.msra.mxu0 0.0
      %206 = vmatprep.subr.mxu0 0.0
      %207 = vmatpush2.msra.mxu0 0.0
      %208 = vmatprep.subr.mxu0 0.0
      %209 = vmatpush2.msra.mxu0 0.0
      %210 = vmatprep.subr.mxu0 0.0
      %211 = vmatpush2.msra.mxu0 0.0
      %212 = vmatprep.subr.mxu0 0.0
      %213 = vmatpush2.msra.mxu0 0.0
      %214 = vmatprep.subr.mxu0 0.0
      %215 = vmatpush2.msra.mxu0 0.0
      %216 = vmatprep.subr.mxu0 0.0
      %217 = vmatpush2.msra.mxu0 0.0
      %218 = vmatprep.subr.mxu0 0.0
      %219 = vmatpush2.msra.mxu0 0.0
      %220 = vmatprep.subr.mxu0 0.0
      %221 = vmatpush2.msra.mxu0 0.0
      %222 = vmatprep.subr.mxu0 0.0
      %223 = vmatpush2.msra.mxu0 0.0
      %224 = vmatprep.subr.mxu0 0.0
      %225 = vmatpush2.msra.mxu0 0.0
      %226 = vmatprep.subr.mxu0 0.0
      %227 = vmatpush2.msra.mxu0 0.0
      %228 = vmatprep.subr.mxu0 0.0
      %229 = vmatpush2.msra.mxu0 0.0
      %230 = vmatprep.subr.mxu0 0.0
      %231 = vmatpush2.msra.mxu0 0.0
      %232 = vmatprep.subr.mxu0 0.0
      %233 = vmatpush2.msra.mxu0 0.0
      %234 = vmatprep.mubr.f32.mxu0 0.0
      %235 = vmatmul.mubr.f32.gmra.mxu0 %v147
      %v236 = vpop.f32.mrf.mxu0
      %v237 = vadd.f32 0.0, %v236
      %v238 = vpop.f32.mrf.mxu0
      %239 = vmatprep.mubr.f32.mxu0 0.0
      %240 = vmatmul.mubr.f32.gmra.mxu0 %v150
      %v241 = vpop.f32.mrf.mxu0
      %v242 = vadd.f32 0.0, %v241
      %v243 = vpop.f32.mrf.mxu0
      %244 = vmatprep.mubr.f32.mxu0 0.0
      %245 = vmatmul.mubr.f32.gmra.mxu0 %v153
      %v246 = vpop.f32.mrf.mxu0
      %v247 = vadd.f32 0.0, %v246
      %v248 = vpop.f32.mrf.mxu0
      %249 = vmatprep.mubr.f32.mxu0 0.0
      %250 = vmatmul.mubr.f32.gmra.mxu0 %v156
      %v251 = vpop.f32.mrf.mxu0
      %v252 = vadd.f32 0.0, %v251
      %v253 = vpop.f32.mrf.mxu0
      %254 = vmatprep.mubr.f32.mxu0 0.0
      %255 = vmatmul.mubr.f32.gmra.mxu0 %v159
      %v256 = vpop.f32.mrf.mxu0
      %v257 = vadd.f32 0.0, %v256
      %v258 = vpop.f32.mrf.mxu0
      %259 = vmatprep.mubr.f32.mxu0 0.0
      %260 = vmatmul.mubr.f32.gmra.mxu0 %v162
      %v261 = vpop.f32.mrf.mxu0
      %v262 = vadd.f32 0.0, %v261
      %v263 = vpop.f32.mrf.mxu0
      %264 = vmatprep.mubr.f32.mxu0 0.0
      %265 = vmatmul.mubr.f32.gmra.mxu0 %v165
      %v266 = vpop.f32.mrf.mxu0
      %v267 = vadd.f32 0.0, %v266
      %v268 = vpop.f32.mrf.mxu0
      %269 = vmatprep.mubr.f32.mxu0 0.0
      %270 = vmatmul.mubr.f32.gmra.mxu0 %v168
      %v271 = vpop.f32.mrf.mxu0
      %v272 = vadd.f32 0.0, %v271
      %v273 = vpop.f32.mrf.mxu0
      %274 = vdwg.mxu0
      %275 = vst.msk [vmem:[%s120] sm:$0xff] %vm145, %v237
      %276 = vst.msk [vmem:[%s120 + $0x8] sm:$0xff] %vm145, %v242
      %277 = vst.msk [vmem:[%s120 + $0x10] sm:$0xff] %vm145, %v247
      %278 = vst.msk [vmem:[%s120 + $0x18] sm:$0xff] %vm145, %v252
      %279 = vst.msk [vmem:[%s120 + $0x20] sm:$0xff] %vm145, %v257
      %280 = vst.msk [vmem:[%s120 + $0x28] sm:$0xff] %vm145, %v262
      %281 = vst.msk [vmem:[%s120 + $0x30] sm:$0xff] %vm145, %v267
      %282 = vst.msk [vmem:[%s120 + $0x38] sm:$0xff] %vm145, %v272
      %s283 = smul.u32 8, %s14
      %p284 = scmp.lt.s32.totalorder %s283, 15
      %s285 = scalar_select %p284, %s283, 15
      %s286 = smul.addr %s285, 8
      %s287 = scalar_lea.vmem %s2, %s286
      // Predicated region
      $region25: #{tpu_custom_call.1} parent=23 // pred_check
        %p288 = pneg %p58
      $region26: #{tpu_custom_call.1} parent=23 // pred_check_branch
        %290 = sbr.rel (%p288) target = $region28
      $region27: #{tpu_custom_call.1} parent=23 // pred_region
        %s291 = smul.u32 8, %s14
      $region28: #{tpu_custom_call.1} parent=23 // pred_fallthru
        _
    $region24: #{tpu_custom_call.1} parent=5 // pred_fallthru
      _
    %p292 = scmp.le.s32.totalorder 2, %s9
    // Predicated region
    $region29: #{tpu_custom_call.1} parent=5 // pred_check
      %p293 = pneg %p292
    $region30: #{tpu_custom_call.1} parent=5 // pred_check_branch
      %295 = sbr.rel (%p293) target = $region32
    $region31: #{tpu_custom_call.1} parent=5 // pred_region
      %s296 = ssub.s32 %s9, 2
      // Predicated region
      $region33: #{tpu_custom_call.1} parent=31 // pred_check
        %p297 = pneg %p64
      $region34: #{tpu_custom_call.1} parent=31 // pred_check_branch
        %299 = sbr.rel (%p297) target = $region36
      $region35: #{tpu_custom_call.1} parent=31 // pred_region
        %s300 = smul.u32 8, %s15
        %p301 = scmp.lt.s32.totalorder %s300, 15
        %s302 = scalar_select %p301, %s300, 15
        %s303 = smul.addr %s302, 8
        %s304 = scalar_lea.vmem %s2, %s303
      $region36: #{tpu_custom_call.1} parent=31 // pred_fallthru
        _
    $region32: #{tpu_custom_call.1} parent=5 // pred_fallthru
      _
  $region6: #{tpu_custom_call.1} parent=0 // loop_footer
    %s13 = sadd.s32 1, %s9
  $region7: #{tpu_custom_call.1} parent=0 // loop_footer_branch
    %8 = sbr.rel target = $region3
  $region8: #{tpu_custom_call.1} parent=0 // loop_exit
    _

</llo_original>
